<compile_context>
chip_gen: v5e
topology: v5e:2x2
jax: 0.10.0
libtpu: 0.0.40
codegen_flags: <defaults>
</compile_context>

<pallas_src>
import jax
import jax.numpy as jnp
from jax.experimental import pallas as pl
from jax.experimental.pallas import tpu as pltpu

TDS_PAD = 128            # tds feature dim (52) zero-padded to one lane width
OUT_FEAT = 1280          # EfficientNet feature dim
D_HALF = OUT_FEAT // 2   # 640: per-core column split of the rnflt head
N_SPLIT = 2              # number of column halves (parallel grid axis)


def glau_kernel(x_ref, we_ref, be_ref, tds_ref, w1_ref, b1_ref, w2_ref,
                w3c_ref, wca_ref, bc_ref, out_ref, acc_ref):
    d = pl.program_id(0)          # rnflt-head column half (parallel axis)
    k = pl.program_id(1)          # K-reduction step (arbitrary axis)
    tk = we_ref.shape[0]          # static K tile size (from the we block)

    @pl.when(k == 0)
    def _init():
        acc_ref[...] = jnp.zeros_like(acc_ref)

    # rnflt stand-in head: x is fully resident; slice this step's K tile
    # in-kernel (no per-step x DMA), bf16 MXU dot with f32 accumulation.
    start = pl.multiple_of(k * tk, tk)
    x_blk = x_ref[:, pl.ds(start, tk)]
    acc_ref[...] += jnp.dot(x_blk, we_ref[...],
                            preferred_element_type=jnp.float32)

    @pl.when(k == pl.num_programs(1) - 1)
    def _finalize():
        # rnflt epilogue for this 640-column half: f32 bias + ReLU (VPU), then
        # its N=1 classifier contribution as a VPU multiply + lane reduction.
        rnflt_half = jnp.maximum(acc_ref[...] + be_ref[...], 0.0)     # (B, 640)
        y_rnflt = jnp.sum(rnflt_half * wca_ref[...], axis=-1, keepdims=True)

        # tds branch MLP + classifier bias only on half d == 0 (tiny compute;
        # the tds half of the classifier is pre-folded: w3c = w3 @ wcb).
        @pl.when(d == 0)
        def _with_tds():
            h1 = jnp.maximum(
                jnp.dot(tds_ref[...], w1_ref[...],
                        preferred_element_type=jnp.float32) + b1_ref[...], 0.0)
            h2 = jnp.maximum(
                jnp.dot(h1.astype(jnp.bfloat16), w2_ref[...],
                        preferred_element_type=jnp.float32), 0.0)     # (B, 512)
            y_tds = jnp.sum(h2 * w3c_ref[...], axis=-1, keepdims=True)
            out_ref[...] = (y_rnflt + y_tds + bc_ref[...])[None]

        @pl.when(d != 0)
        def _rnflt_only():
            out_ref[...] = y_rnflt[None]


def prepare_params(params, img_flat_dim, *, tk=1024):
    """One-time (per-weight-update) prep hoisted out of the per-call forward:
    bf16 casts, zero padding of we (to a tk multiple) and w1 (to 128 rows),
    and folding the last linear tds layer into the classifier (w3 @ wcb)."""
    k_pad = pl.cdiv(img_flat_dim, tk) * tk
    we_p = jnp.pad(params["we"],
                   ((0, k_pad - params["we"].shape[0]), (0, 0))
                   ).astype(jnp.bfloat16)                        # (k_pad, 1280)
    w1_p = jnp.pad(params["w1"],
                   ((0, TDS_PAD - params["w1"].shape[0]), (0, 0))
                   ).astype(jnp.bfloat16)                        # (128, 128)
    w2_bf = params["w2"].astype(jnp.bfloat16)                    # (128, 512)
    w3c = (params["w3"] @ params["wcb"]).reshape(1, -1)          # (1, 512) f32
    wca = params["wca"].reshape(1, -1)                           # (1, 1280) f32
    return {
        "we": we_p, "be": params["be"], "w1": w1_p, "b1": params["b1"],
        "w2": w2_bf, "w3c": w3c, "wca": wca, "bc": params["bc"],
        "tk": tk, "k_img": img_flat_dim,
    }


def glau_classifier_forward(x, tds, prep):
    B = x.shape[0]
    tk = prep["tk"]
    k_pad = prep["we"].shape[0]
    nk = k_pad // tk
    assert prep["we"].shape[1] == OUT_FEAT

    # Per-call activation prep only: flatten/pad/cast x, pad/cast tds.
    x_flat = x.reshape(B, -1)
    assert x_flat.shape[1] == prep["k_img"]
    x_p = jnp.pad(x_flat, ((0, 0), (0, k_pad - x_flat.shape[1]))
                  ).astype(jnp.bfloat16)                         # (B, k_pad)
    tds_p = jnp.pad(tds, ((0, 0), (0, TDS_PAD - tds.shape[1]))
                    ).astype(jnp.bfloat16)                       # (B, 128)

    in_specs = [
        pl.BlockSpec((B, k_pad), lambda d, k: (0, 0)),       # x: fully resident
        pl.BlockSpec((tk, D_HALF), lambda d, k: (k, d)),     # we: (K, N) tiled
        pl.BlockSpec((1, D_HALF), lambda d, k: (0, d)),      # be: per-half
        pl.BlockSpec((B, TDS_PAD), lambda d, k: (0, 0)),     # tds: resident
        pl.BlockSpec((TDS_PAD, 128), lambda d, k: (0, 0)),   # w1: resident
        pl.BlockSpec((1, 128), lambda d, k: (0, 0)),         # b1: resident
        pl.BlockSpec((128, 512), lambda d, k: (0, 0)),       # w2: resident
        pl.BlockSpec((1, 512), lambda d, k: (0, 0)),         # w3c: resident
        pl.BlockSpec((1, D_HALF), lambda d, k: (0, d)),      # wca: per-half
        pl.BlockSpec((1, 1), lambda d, k: (0, 0)),           # bc: resident
    ]
    out_spec = pl.BlockSpec((1, B, 1), lambda d, k: (d, 0, 0))

    y_parts = pl.pallas_call(
        glau_kernel,
        out_shape=jax.ShapeDtypeStruct((N_SPLIT, B, 1), jnp.float32),
        grid_spec=pltpu.PrefetchScalarGridSpec(
            num_scalar_prefetch=0,
            grid=(N_SPLIT, nk),
            in_specs=in_specs,
            out_specs=out_spec,
            scratch_shapes=[pltpu.VMEM((B, D_HALF), jnp.float32)],
        ),
        compiler_params=pltpu.CompilerParams(
            dimension_semantics=("parallel", "arbitrary"),
            vmem_limit_bytes=32 << 20,
        ),
    )(x_p, prep["we"], prep["be"], tds_p, prep["w1"], prep["b1"],
      prep["w2"], prep["w3c"], prep["wca"], prep["bc"])

    return y_parts.sum(axis=0)                                   # (B, 1)


def init_params(img_flat_dim, out_feat=OUT_FEAT):
    key = jax.random.PRNGKey(0)
    ks = jax.random.split(key, 8)

    def lin(k, fan_in, fan_out):
        return (jax.random.normal(k, (fan_in, fan_out), jnp.float32)
                / jnp.sqrt(jnp.float32(fan_in)))

    wc = lin(ks[5], 2 * out_feat, 1)
    return {
        # stand-in rnflt encoder head: (C*H*W) -> 1280
        "we": lin(ks[0], img_flat_dim, out_feat),
        "be": jnp.zeros((1, out_feat), jnp.float32),
        # tds_encoder
        "w1": lin(ks[1], 52, 128),
        "b1": 0.01 * jax.random.normal(ks[2], (1, 128), jnp.float32),
        "w2": lin(ks[3], 128, 512),
        "w3": lin(ks[4], 512, out_feat),
        # classifier Linear(2*1280, 1) split into rnflt half and tds half
        "wca": wc[:out_feat, :],
        "wcb": wc[out_feat:, :],
        "bc": jnp.zeros((1, 1), jnp.float32),
    }


def reference_forward(x, tds, p):
    # Pure f32, unfolded, unpadded reference matching the module semantics.
    B = x.shape[0]
    xf = x.reshape(B, -1)
    rnflt = jnp.maximum(xf @ p["we"] + p["be"], 0.0)
    h1 = jnp.maximum(tds @ p["w1"] + p["b1"], 0.0)
    h2 = jnp.maximum(h1 @ p["w2"], 0.0)
    tf = h2 @ p["w3"]
    feat = jnp.concatenate([rnflt, tf], axis=-1)
    wc = jnp.concatenate([p["wca"], p["wcb"]], axis=0)
    return feat @ wc + p["bc"]


if __name__ == "__main__":
    B, C, H, W = 2, 1, 16, 16           # small shapes consistent with in_dim=1
    key = jax.random.PRNGKey(0)
    kx, kt = jax.random.split(key)
    x = jax.random.normal(kx, (B, C, H, W), jnp.float32)   # NCHW, like PyTorch
    tds = jax.random.normal(kt, (B, 52), jnp.float32)

    params = init_params(C * H * W)
    # tk=128 here only so the small test exercises the multi-step K reduction;
    # real flatten dims (~62K) should use the tk=1024 default (or larger).
    prep = prepare_params(params, C * H * W, tk=128)

    y = glau_classifier_forward(x, tds, prep)
    y = jax.block_until_ready(y)

    y_ref = reference_forward(x, tds, params)
    assert y.shape == (B, 1)
    # bf16 matmul inputs + folded classifier + split-half summation change
    # rounding/summation order; tolerance sized for that.
    assert jnp.allclose(y, y_ref, atol=5e-2, rtol=5e-2), (y, y_ref)
    print("KERNEL_OK")
</pallas_src>

<mosaic_0001>
module attributes {stable_mosaic.version = 11 : i64} {
  func.func @glau_kernel(%arg0: i32, %arg1: i32, %arg2: memref<2x256xbf16, #tpu.memory_space<vmem>>, %arg3: memref<128x640xbf16, #tpu.memory_space<vmem>>, %arg4: memref<1x640xf32, #tpu.memory_space<vmem>>, %arg5: memref<2x128xbf16, #tpu.memory_space<vmem>>, %arg6: memref<128x128xbf16, #tpu.memory_space<vmem>>, %arg7: memref<1x128xf32, #tpu.memory_space<vmem>>, %arg8: memref<128x512xbf16, #tpu.memory_space<vmem>>, %arg9: memref<1x512xf32, #tpu.memory_space<vmem>>, %arg10: memref<1x640xf32, #tpu.memory_space<vmem>>, %arg11: memref<1x1xf32, #tpu.memory_space<vmem>>, %arg12: memref<1x2x1xf32, #tpu.memory_space<vmem>>, %arg13: memref<2x640xf32, #tpu.memory_space<vmem>>) attributes {dimension_semantics = [#tpu.dimension_semantics<parallel>, #tpu.dimension_semantics<arbitrary>], iteration_bounds = array<i64: 2, 2>, scalar_prefetch = 0 : i64, scratch_operands = 1 : i64, tpu.core_type = #tpu.core_type<tc>, window_params = [{pipeline_mode = #tpu.pipeline_mode<synchronous>, transform_indices = @transform_0, window_bounds = array<i64: 2, 256>}, {transform_indices = @transform_1, window_bounds = array<i64: 128, 640>}, {transform_indices = @transform_2, window_bounds = array<i64: 1, 640>}, {pipeline_mode = #tpu.pipeline_mode<synchronous>, transform_indices = @transform_3, window_bounds = array<i64: 2, 128>}, {pipeline_mode = #tpu.pipeline_mode<synchronous>, transform_indices = @transform_4, window_bounds = array<i64: 128, 128>}, {pipeline_mode = #tpu.pipeline_mode<synchronous>, transform_indices = @transform_5, window_bounds = array<i64: 1, 128>}, {pipeline_mode = #tpu.pipeline_mode<synchronous>, transform_indices = @transform_6, window_bounds = array<i64: 128, 512>}, {pipeline_mode = #tpu.pipeline_mode<synchronous>, transform_indices = @transform_7, window_bounds = array<i64: 1, 512>}, {transform_indices = @transform_8, window_bounds = array<i64: 1, 640>}, {pipeline_mode = #tpu.pipeline_mode<synchronous>, transform_indices = @transform_9, window_bounds = array<i64: 1, 1>}, {transform_indices = @transform_10, window_bounds = array<i64: 1, 2, 1>}]} {
    %c0_i32 = arith.constant 0 : i32
    %0 = arith.cmpi eq, %arg1, %c0_i32 : i32
    %1 = arith.extui %0 : i1 to i32
    %c0_i32_0 = arith.constant 0 : i32
    %2 = arith.cmpi ne, %1, %c0_i32_0 : i32
    scf.if %2 {
      %cst_8 = arith.constant 0.000000e+00 : f32
      %15 = vector.broadcast %cst_8 : f32 to vector<2x640xf32>
      %c0_9 = arith.constant 0 : index
      %c0_10 = arith.constant 0 : index
      %16 = vector.load %arg13[%c0_9, %c0_10] : memref<2x640xf32, #tpu.memory_space<vmem>>, vector<2x640xf32>
      tpu.vector_store %arg13[%c0_9, %c0_10], %15 {strides = array<i32>} : memref<2x640xf32, #tpu.memory_space<vmem>>, vector<2x640xf32>,
    } else {
    }
    %c128_i32 = arith.constant 128 : i32
    %3 = arith.muli %arg1, %c128_i32 : i32
    %4 = tpu.assume_multiple %3, 128 : i32
    %c0 = arith.constant 0 : index
    %5 = arith.index_cast %4 : i32 to index
    %6 = vector.load %arg2[%c0, %5] : memref<2x256xbf16, #tpu.memory_space<vmem>>, vector<2x128xbf16>
    %c0_1 = arith.constant 0 : index
    %c0_2 = arith.constant 0 : index
    %7 = vector.load %arg13[%c0_1, %c0_2] : memref<2x640xf32, #tpu.memory_space<vmem>>, vector<2x640xf32>
    %c0_3 = arith.constant 0 : index
    %c0_4 = arith.constant 0 : index
    %8 = vector.load %arg3[%c0_3, %c0_4] : memref<128x640xbf16, #tpu.memory_space<vmem>>, vector<128x640xbf16>
    %cst = arith.constant dense<0.000000e+00> : vector<2x640xf32>
    %9 = tpu.matmul %6, %8, %cst {dimension_numbers = #tpu.dot_dimension_numbers<[1], [0], [0], [1], [0, 0, 1, 1], [], []>} : vector<2x128xbf16>, vector<128x640xbf16>, vector<2x640xf32> -> vector<2x640xf32>
    %10 = arith.addf %7, %9 : vector<2x640xf32>
    %c0_5 = arith.constant 0 : index
    %c0_6 = arith.constant 0 : index
    %11 = vector.load %arg13[%c0_5, %c0_6] : memref<2x640xf32, #tpu.memory_space<vmem>>, vector<2x640xf32>
    tpu.vector_store %arg13[%c0_5, %c0_6], %10 {strides = array<i32>} : memref<2x640xf32, #tpu.memory_space<vmem>>, vector<2x640xf32>,
    %c1_i32 = arith.constant 1 : i32
    %12 = arith.cmpi eq, %arg1, %c1_i32 : i32
    %13 = arith.extui %12 : i1 to i32
    %c0_i32_7 = arith.constant 0 : i32
    %14 = arith.cmpi ne, %13, %c0_i32_7 : i32
    scf.if %14 {
      %c0_8 = arith.constant 0 : index
      %c0_9 = arith.constant 0 : index
      %15 = vector.load %arg13[%c0_8, %c0_9] : memref<2x640xf32, #tpu.memory_space<vmem>>, vector<2x640xf32>
      %c0_10 = arith.constant 0 : index
      %c0_11 = arith.constant 0 : index
      %16 = vector.load %arg4[%c0_10, %c0_11] : memref<1x640xf32, #tpu.memory_space<vmem>>, vector<1x640xf32>
      %17 = vector.broadcast %16 : vector<1x640xf32> to vector<2x640xf32>
      %18 = arith.addf %15, %17 : vector<2x640xf32>
      %cst_12 = arith.constant 0.000000e+00 : f32
      %19 = vector.broadcast %cst_12 : f32 to vector<2x640xf32>
      %20 = arith.maximumf %18, %19 : vector<2x640xf32>
      %c0_13 = arith.constant 0 : index
      %c0_14 = arith.constant 0 : index
      %21 = vector.load %arg10[%c0_13, %c0_14] : memref<1x640xf32, #tpu.memory_space<vmem>>, vector<1x640xf32>
      %22 = vector.broadcast %21 : vector<1x640xf32> to vector<2x640xf32>
      %23 = arith.mulf %20, %22 : vector<2x640xf32>
      %cst_15 = arith.constant dense<0.000000e+00> : vector<2xf32>
      %24 = vector.multi_reduction <add>, %23, %cst_15 [1] : vector<2x640xf32> to vector<2xf32>
      %25 = vector.shape_cast %24 : vector<2xf32> to vector<2x1xf32>
      %c0_i32_16 = arith.constant 0 : i32
      %26 = arith.cmpi eq, %arg0, %c0_i32_16 : i32
      %27 = arith.extui %26 : i1 to i32
      %c0_i32_17 = arith.constant 0 : i32
      %28 = arith.cmpi ne, %27, %c0_i32_17 : i32
      scf.if %28 {
        %c0_20 = arith.constant 0 : index
        %c0_21 = arith.constant 0 : index
        %32 = vector.load %arg5[%c0_20, %c0_21] : memref<2x128xbf16, #tpu.memory_space<vmem>>, vector<2x128xbf16>
        %c0_22 = arith.constant 0 : index
        %c0_23 = arith.constant 0 : index
        %33 = vector.load %arg6[%c0_22, %c0_23] : memref<128x128xbf16, #tpu.memory_space<vmem>>, vector<128x128xbf16>
        %cst_24 = arith.constant dense<0.000000e+00> : vector<2x128xf32>
        %34 = tpu.matmul %32, %33, %cst_24 {dimension_numbers = #tpu.dot_dimension_numbers<[1], [0], [0], [1], [0, 0, 1, 1], [], []>} : vector<2x128xbf16>, vector<128x128xbf16>, vector<2x128xf32> -> vector<2x128xf32>
        %c0_25 = arith.constant 0 : index
        %c0_26 = arith.constant 0 : index
        %35 = vector.load %arg7[%c0_25, %c0_26] : memref<1x128xf32, #tpu.memory_space<vmem>>, vector<1x128xf32>
        %36 = vector.broadcast %35 : vector<1x128xf32> to vector<2x128xf32>
        %37 = arith.addf %34, %36 : vector<2x128xf32>
        %cst_27 = arith.constant 0.000000e+00 : f32
        %38 = vector.broadcast %cst_27 : f32 to vector<2x128xf32>
        %39 = arith.maximumf %37, %38 : vector<2x128xf32>
        %40 = arith.truncf %39 : vector<2x128xf32> to vector<2x128xbf16>
        %c0_28 = arith.constant 0 : index
        %c0_29 = arith.constant 0 : index
        %41 = vector.load %arg8[%c0_28, %c0_29] : memref<128x512xbf16, #tpu.memory_space<vmem>>, vector<128x512xbf16>
        %cst_30 = arith.constant dense<0.000000e+00> : vector<2x512xf32>
        %42 = tpu.matmul %40, %41, %cst_30 {dimension_numbers = #tpu.dot_dimension_numbers<[1], [0], [0], [1], [0, 0, 1, 1], [], []>} : vector<2x128xbf16>, vector<128x512xbf16>, vector<2x512xf32> -> vector<2x512xf32>
        %cst_31 = arith.constant 0.000000e+00 : f32
        %43 = vector.broadcast %cst_31 : f32 to vector<2x512xf32>
        %44 = arith.maximumf %42, %43 : vector<2x512xf32>
        %c0_32 = arith.constant 0 : index
        %c0_33 = arith.constant 0 : index
        %45 = vector.load %arg9[%c0_32, %c0_33] : memref<1x512xf32, #tpu.memory_space<vmem>>, vector<1x512xf32>
        %46 = vector.broadcast %45 : vector<1x512xf32> to vector<2x512xf32>
        %47 = arith.mulf %44, %46 : vector<2x512xf32>
        %cst_34 = arith.constant dense<0.000000e+00> : vector<2xf32>
        %48 = vector.multi_reduction <add>, %47, %cst_34 [1] : vector<2x512xf32> to vector<2xf32>
        %49 = vector.shape_cast %48 : vector<2xf32> to vector<2x1xf32>
        %50 = arith.addf %25, %49 : vector<2x1xf32>
        %c0_35 = arith.constant 0 : index
        %c0_36 = arith.constant 0 : index
        %51 = vector.load %arg11[%c0_35, %c0_36] : memref<1x1xf32, #tpu.memory_space<vmem>>, vector<1x1xf32>
        %52 = vector.broadcast %51 : vector<1x1xf32> to vector<2x1xf32>
        %53 = arith.addf %50, %52 : vector<2x1xf32>
        %54 = vector.shape_cast %53 : vector<2x1xf32> to vector<1x2x1xf32>
        %c0_37 = arith.constant 0 : index
        %c0_38 = arith.constant 0 : index
        %c0_39 = arith.constant 0 : index
        %55 = vector.load %arg12[%c0_37, %c0_38, %c0_39] : memref<1x2x1xf32, #tpu.memory_space<vmem>>, vector<1x2x1xf32>
        tpu.vector_store %arg12[%c0_37, %c0_38, %c0_39], %54 {strides = array<i32>} : memref<1x2x1xf32, #tpu.memory_space<vmem>>, vector<1x2x1xf32>,
      } else {
      }
      %c0_i32_18 = arith.constant 0 : i32
      %29 = arith.cmpi ne, %arg0, %c0_i32_18 : i32
      %30 = arith.extui %29 : i1 to i32
      %c0_i32_19 = arith.constant 0 : i32
      %31 = arith.cmpi ne, %30, %c0_i32_19 : i32
      scf.if %31 {
        %32 = vector.shape_cast %25 : vector<2x1xf32> to vector<1x2x1xf32>
        %c0_20 = arith.constant 0 : index
        %c0_21 = arith.constant 0 : index
        %c0_22 = arith.constant 0 : index
        %33 = vector.load %arg12[%c0_20, %c0_21, %c0_22] : memref<1x2x1xf32, #tpu.memory_space<vmem>>, vector<1x2x1xf32>
        tpu.vector_store %arg12[%c0_20, %c0_21, %c0_22], %32 {strides = array<i32>} : memref<1x2x1xf32, #tpu.memory_space<vmem>>, vector<1x2x1xf32>,
      } else {
      }
    } else {
    }
    return
  }
  func.func @transform_0(%arg0: i32, %arg1: i32) -> (i32, i32) {
    %c0_i32 = arith.constant 0 : i32
    %c0_i32_0 = arith.constant 0 : i32
    %c0_i32_1 = arith.constant 0 : i32
    return %c0_i32, %c0_i32_0 : i32, i32
  }
  func.func @transform_1(%arg0: i32, %arg1: i32) -> (i32, i32) {
    %c0_i32 = arith.constant 0 : i32
    return %arg1, %arg0 : i32, i32
  }
  func.func @transform_2(%arg0: i32, %arg1: i32) -> (i32, i32) {
    %c0_i32 = arith.constant 0 : i32
    %c0_i32_0 = arith.constant 0 : i32
    return %c0_i32, %arg0 : i32, i32
  }
  func.func @transform_3(%arg0: i32, %arg1: i32) -> (i32, i32) {
    %c0_i32 = arith.constant 0 : i32
    %c0_i32_0 = arith.constant 0 : i32
    %c0_i32_1 = arith.constant 0 : i32
    return %c0_i32, %c0_i32_0 : i32, i32
  }
  func.func @transform_4(%arg0: i32, %arg1: i32) -> (i32, i32) {
    %c0_i32 = arith.constant 0 : i32
    %c0_i32_0 = arith.constant 0 : i32
    %c0_i32_1 = arith.constant 0 : i32
    return %c0_i32, %c0_i32_0 : i32, i32
  }
  func.func @transform_5(%arg0: i32, %arg1: i32) -> (i32, i32) {
    %c0_i32 = arith.constant 0 : i32
    %c0_i32_0 = arith.constant 0 : i32
    %c0_i32_1 = arith.constant 0 : i32
    return %c0_i32, %c0_i32_0 : i32, i32
  }
  func.func @transform_6(%arg0: i32, %arg1: i32) -> (i32, i32) {
    %c0_i32 = arith.constant 0 : i32
    %c0_i32_0 = arith.constant 0 : i32
    %c0_i32_1 = arith.constant 0 : i32
    return %c0_i32, %c0_i32_0 : i32, i32
  }
  func.func @transform_7(%arg0: i32, %arg1: i32) -> (i32, i32) {
    %c0_i32 = arith.constant 0 : i32
    %c0_i32_0 = arith.constant 0 : i32
    %c0_i32_1 = arith.constant 0 : i32
    return %c0_i32, %c0_i32_0 : i32, i32
  }
  func.func @transform_8(%arg0: i32, %arg1: i32) -> (i32, i32) {
    %c0_i32 = arith.constant 0 : i32
    %c0_i32_0 = arith.constant 0 : i32
    return %c0_i32, %arg0 : i32, i32
  }
  func.func @transform_9(%arg0: i32, %arg1: i32) -> (i32, i32) {
    %c0_i32 = arith.constant 0 : i32
    %c0_i32_0 = arith.constant 0 : i32
    %c0_i32_1 = arith.constant 0 : i32
    return %c0_i32, %c0_i32_0 : i32, i32
  }
  func.func @transform_10(%arg0: i32, %arg1: i32) -> (i32, i32, i32) {
    %c0_i32 = arith.constant 0 : i32
    %c0_i32_0 = arith.constant 0 : i32
    %c0_i32_1 = arith.constant 0 : i32
    return %arg0, %c0_i32, %c0_i32_0 : i32, i32, i32
  }
}

</mosaic_0001>

<llo_original>
// kernel: tpu_custom_call.1
$region0: #{tpu_custom_call.1}
  #allocation0 [shape = 'u32[]', space=smem, size = 0x4, offset = 0x4, fixed_abs, tag = 'smem constant byte address 0x4 - core index']
  #allocation1 [shape = 'u32[72,128]{1,0:T(1,128)}', space=vmem, size = 0x9000, scoped, tag = 'internal scratch']
  #allocation2 [shape = 'f32[2,640]{1,0:T(2,128)}', space=vmem, size = 0x1400, scoped, tag = 'scratch operand']
  #allocation3 [shape = 'f32[1,1]{1,0:T(1,128)S(1)}', space=vmem, size = 0x200, scoped, tag = 'scoped memory for tpu_custom_call.1']
  %s0 = inlined_call_operand.hbm [shape: bf16[2,256], index: 0, kind: input, shape index: {}]
  %s1 = inlined_call_operand.hbm [shape: bf16[256,1280], index: 1, kind: input, shape index: {}]
  %s2 = inlined_call_operand.hbm [shape: f32[1,1280], index: 2, kind: input, shape index: {}]
  %s3 = inlined_call_operand.vmem [shape: bf16[2,128], index: 3, kind: input, shape index: {}]
  %s4 = inlined_call_operand.hbm [shape: bf16[128,128], index: 4, kind: input, shape index: {}]
  %s5 = inlined_call_operand.vmem [shape: f32[1,128], index: 5, kind: input, shape index: {}]
  %s6 = inlined_call_operand.hbm [shape: bf16[128,512], index: 6, kind: input, shape index: {}]
  %s7 = inlined_call_operand.vmem [shape: f32[1,512], index: 7, kind: input, shape index: {}]
  %s8 = inlined_call_operand.hbm [shape: f32[1,1280], index: 8, kind: input, shape index: {}]
  %s9 = inlined_call_operand.<no memory space> [shape: f32[1,1], index: 9, kind: input, shape index: {}]
  %s10 = inlined_call_operand.vmem [shape: f32[2,2,1], index: 10, kind: output, shape index: {}]
  %s11 = sld [smem:[#allocation0]]
  $region113: #{tpu_custom_call.1} parent=0
    _
  %s13 = ssub.s32 1, %s11
  %s14 = scalar_select 0, %s13, %s11
  %v15 = vstv %s9
  %16 = vst [vmem:[#allocation3] sm:$0x1] %v15
  $region1: #{tpu_custom_call.1} parent=0
    #allocation4 [shape = 'u8[1024]{0}', space=vmem, size = 0x400, scoped, tag = 'input window, operand 0, single buffered']
    #allocation5 [shape = 's32[2]{0}', space=sflag, size = 0x8, scoped, tag = 'scoped memory for tpu_custom_call.1']
    #allocation6 [shape = 'u8[327680]{0}', space=vmem, size = 0x50000, scoped, tag = 'input window, operand 1']
    #allocation7 [shape = 's32[2]{0}', space=sflag, size = 0x8, scoped, tag = 'scoped memory for tpu_custom_call.1']
    #allocation8 [shape = 'u8[5120]{0}', space=vmem, size = 0x1400, scoped, tag = 'input window, operand 2']
    #allocation9 [shape = 'u8[32768]{0}', space=vmem, size = 0x8000, scoped, tag = 'input window, operand 4, single buffered']
    #allocation10 [shape = 's32[1]{0}', space=sflag, size = 0x4, scoped, tag = 'scoped memory for tpu_custom_call.1']
    #allocation11 [shape = 'u8[131072]{0}', space=vmem, size = 0x20000, scoped, tag = 'input window, operand 6, single buffered']
    #allocation12 [shape = 'u8[5120]{0}', space=vmem, size = 0x1400, scoped, tag = 'input window, operand 8']
    #allocation13 [shape = 's32[2]{0}', space=sflag, size = 0x8, scoped, tag = 'scoped memory for tpu_custom_call.1']
    %17 = vsyncpa [#allocation5], 0
    %18 = vsyncpa [#allocation7], 0
    %s19 = scalar_lea.sflag [#allocation7], 1
    %20 = vsyncpa %s19, 0
    %21 = vsyncpa [#allocation10], 0
    %22 = vsyncpa [#allocation13], 0
    %s23 = scalar_lea.sflag [#allocation13], 1
    %24 = vsyncpa %s23, 0
    loop: start=0, step=1, limit=6
    $region2: #{tpu_custom_call.1} parent=1 // loop_pre_header
      _
    $region3: #{tpu_custom_call.1} parent=1 // loop_header
      %s26 = sphi 0, %s30
      %p27 = scmp.ge.s32.totalorder %s26, 6
      %s33 = sphi 0, %s45
      %s34 = sphi 0, %s41
      %s35 = sphi 0, %s33
      %s36 = sphi 0, %s34
      %s37 = sphi 0, %s35
      %s38 = sphi 0, %s36
      %s46 = sphi 0, %s46
      %s48 = sphi 0, %s46
      %s49 = sphi 0, %s48
      %s63 = sphi 0, %s49
      %s71 = sphi 0, %s73
      %s74 = sphi 0, %s71
      %s75 = sphi 0, %s74
      %s91 = sphi 0, %s75
      %s97 = sphi 0, %s99
      %s100 = sphi 0, %s97
      %s101 = sphi 0, %s100
      %s117 = sphi 0, %s101
      %s121 = sphi 0, %s121
      %s123 = sphi 0, %s121
      %s124 = sphi 0, %s123
      %s138 = sphi 0, %s124
      %s142 = sphi 0, %s142
      %s144 = sphi 0, %s142
      %s145 = sphi 0, %s144
      %s159 = sphi 0, %s145
      %s163 = sphi 0, %s163
      %s165 = sphi 0, %s163
      %s166 = sphi 0, %s165
      %s180 = sphi 0, %s166
      %s184 = sphi 0, %s184
      %s186 = sphi 0, %s184
      %s187 = sphi 0, %s186
      %s201 = sphi 0, %s187
      %s205 = sphi 0, %s205
      %s207 = sphi 0, %s205
      %s208 = sphi 0, %s207
      %s222 = sphi 0, %s208
      %s228 = sphi 0, %s230
      %s231 = sphi 0, %s228
      %s232 = sphi 0, %s231
      %s248 = sphi 0, %s232
      %s252 = sphi 0, %s252
      %s254 = sphi 0, %s252
      %s255 = sphi 0, %s254
      %s269 = sphi 0, %s255
      %s275 = sphi 0, %s277
      %s278 = sphi 0, %s275
      %s279 = sphi 0, %s278
      %s295 = sphi 0, %s279
    $region4: #{tpu_custom_call.1} parent=1 // loop_header_branch
      %29 = sbr.rel (%p27) target = $region8
    $region5: #{tpu_custom_call.1} parent=1 // loop_body
      %s31 = ssub.s32 %s26, 1
      %s32 = ssub.s32 %s26, 2
      %s39 = sadd.s32 1, %s34
      %p40 = scmp.ge.s32.totalorder %s39, 2
      %s41 = scalar_select %p40, 0, %s39
      %s42 = sadd.s32 1, %s33
      %s43 = scalar_select %p40, %s42, %s33
      %p44 = scmp.ge.s32.totalorder %s43, 2
      %s45 = scalar_select %p44, 0, %s43
      %s47 = sadd.s32 %s46, 1
      %p50 = scmp.eq.s32.totalorder %s26, 3
      %p51 = scmp.ne.s32.totalorder %s46, %s48
      %p52 = scmp.eq.s32.totalorder %s26, 0
      %p53 = por %p51, %p52
      %p54 = scmp.ne.s32.totalorder %s46, %s48
      %p55 = scmp.eq.s32.totalorder %s31, 3
      %p56 = por %p54, %p55
      %p57 = scmp.ne.s32.totalorder %s48, %s49
      %p58 = scmp.eq.s32.totalorder %s31, 0
      %p59 = por %p57, %p58
      %p60 = scmp.ne.s32.totalorder %s48, %s49
      %p61 = scmp.eq.s32.totalorder %s32, 3
      %p62 = por %p60, %p61
      %p64 = scmp.ne.s32.totalorder %s49, %s63
      %p65 = scmp.eq.s32.totalorder %s32, 0
      %p66 = por %p64, %p65
      %s67 = ssub.s32 %s34, %s41
      %s68 = ssub.s32 %s33, %s45
      %s69 = sor.u32 %s67, %s68
      %p70 = scmp.eq.s32.totalorder %s69, 0
      %s72 = sadd.s32 %s71, 1
      %s73 = scalar_select %p70, %s71, %s72
      %p76 = pneg %p70
      %p77 = scmp.eq.s32.totalorder %s26, 3
      %p78 = por %p76, %p77
      %p79 = scmp.ne.s32.totalorder %s71, %s74
      %p80 = scmp.eq.s32.totalorder %s26, 0
      %p81 = por %p79, %p80
      %p82 = scmp.ne.s32.totalorder %s71, %s74
      %p83 = scmp.eq.s32.totalorder %s31, 3
      %p84 = por %p82, %p83
      %p85 = scmp.ne.s32.totalorder %s74, %s75
      %p86 = scmp.eq.s32.totalorder %s31, 0
      %p87 = por %p85, %p86
      %p88 = scmp.ne.s32.totalorder %s74, %s75
      %p89 = scmp.eq.s32.totalorder %s32, 3
      %p90 = por %p88, %p89
      %p92 = scmp.ne.s32.totalorder %s75, %s91
      %p93 = scmp.eq.s32.totalorder %s32, 0
      %p94 = por %p92, %p93
      %s95 = ssub.s32 %s33, %s45
      %p96 = scmp.eq.s32.totalorder %s95, 0
      %s98 = sadd.s32 %s97, 1
      %s99 = scalar_select %p96, %s97, %s98
      %p102 = pneg %p96
      %p103 = scmp.eq.s32.totalorder %s26, 3
      %p104 = por %p102, %p103
      %p105 = scmp.ne.s32.totalorder %s97, %s100
      %p106 = scmp.eq.s32.totalorder %s26, 0
      %p107 = por %p105, %p106
      %p108 = scmp.ne.s32.totalorder %s97, %s100
      %p109 = scmp.eq.s32.totalorder %s31, 3
      %p110 = por %p108, %p109
      %p111 = scmp.ne.s32.totalorder %s100, %s101
      %p112 = scmp.eq.s32.totalorder %s31, 0
      %p113 = por %p111, %p112
      %p114 = scmp.ne.s32.totalorder %s100, %s101
      %p115 = scmp.eq.s32.totalorder %s32, 3
      %p116 = por %p114, %p115
      %p118 = scmp.ne.s32.totalorder %s101, %s117
      %p119 = scmp.eq.s32.totalorder %s32, 0
      %p120 = por %p118, %p119
      %s122 = sadd.s32 %s121, 1
      %p125 = scmp.eq.s32.totalorder %s26, 3
      %p126 = scmp.ne.s32.totalorder %s121, %s123
      %p127 = scmp.eq.s32.totalorder %s26, 0
      %p128 = por %p126, %p127
      %p129 = scmp.ne.s32.totalorder %s121, %s123
      %p130 = scmp.eq.s32.totalorder %s31, 3
      %p131 = por %p129, %p130
      %p132 = scmp.ne.s32.totalorder %s123, %s124
      %p133 = scmp.eq.s32.totalorder %s31, 0
      %p134 = por %p132, %p133
      %p135 = scmp.ne.s32.totalorder %s123, %s124
      %p136 = scmp.eq.s32.totalorder %s32, 3
      %p137 = por %p135, %p136
      %p139 = scmp.ne.s32.totalorder %s124, %s138
      %p140 = scmp.eq.s32.totalorder %s32, 0
      %p141 = por %p139, %p140
      %s143 = sadd.s32 %s142, 1
      %p146 = scmp.eq.s32.totalorder %s26, 3
      %p147 = scmp.ne.s32.totalorder %s142, %s144
      %p148 = scmp.eq.s32.totalorder %s26, 0
      %p149 = por %p147, %p148
      %p150 = scmp.ne.s32.totalorder %s142, %s144
      %p151 = scmp.eq.s32.totalorder %s31, 3
      %p152 = por %p150, %p151
      %p153 = scmp.ne.s32.totalorder %s144, %s145
      %p154 = scmp.eq.s32.totalorder %s31, 0
      %p155 = por %p153, %p154
      %p156 = scmp.ne.s32.totalorder %s144, %s145
      %p157 = scmp.eq.s32.totalorder %s32, 3
      %p158 = por %p156, %p157
      %p160 = scmp.ne.s32.totalorder %s145, %s159
      %p161 = scmp.eq.s32.totalorder %s32, 0
      %p162 = por %p160, %p161
      %s164 = sadd.s32 %s163, 1
      %p167 = scmp.eq.s32.totalorder %s26, 3
      %p168 = scmp.ne.s32.totalorder %s163, %s165
      %p169 = scmp.eq.s32.totalorder %s26, 0
      %p170 = por %p168, %p169
      %p171 = scmp.ne.s32.totalorder %s163, %s165
      %p172 = scmp.eq.s32.totalorder %s31, 3
      %p173 = por %p171, %p172
      %p174 = scmp.ne.s32.totalorder %s165, %s166
      %p175 = scmp.eq.s32.totalorder %s31, 0
      %p176 = por %p174, %p175
      %p177 = scmp.ne.s32.totalorder %s165, %s166
      %p178 = scmp.eq.s32.totalorder %s32, 3
      %p179 = por %p177, %p178
      %p181 = scmp.ne.s32.totalorder %s166, %s180
      %p182 = scmp.eq.s32.totalorder %s32, 0
      %p183 = por %p181, %p182
      %s185 = sadd.s32 %s184, 1
      %p188 = scmp.eq.s32.totalorder %s26, 3
      %p189 = scmp.ne.s32.totalorder %s184, %s186
      %p190 = scmp.eq.s32.totalorder %s26, 0
      %p191 = por %p189, %p190
      %p192 = scmp.ne.s32.totalorder %s184, %s186
      %p193 = scmp.eq.s32.totalorder %s31, 3
      %p194 = por %p192, %p193
      %p195 = scmp.ne.s32.totalorder %s186, %s187
      %p196 = scmp.eq.s32.totalorder %s31, 0
      %p197 = por %p195, %p196
      %p198 = scmp.ne.s32.totalorder %s186, %s187
      %p199 = scmp.eq.s32.totalorder %s32, 3
      %p200 = por %p198, %p199
      %p202 = scmp.ne.s32.totalorder %s187, %s201
      %p203 = scmp.eq.s32.totalorder %s32, 0
      %p204 = por %p202, %p203
      %s206 = sadd.s32 %s205, 1
      %p209 = scmp.eq.s32.totalorder %s26, 3
      %p210 = scmp.ne.s32.totalorder %s205, %s207
      %p211 = scmp.eq.s32.totalorder %s26, 0
      %p212 = por %p210, %p211
      %p213 = scmp.ne.s32.totalorder %s205, %s207
      %p214 = scmp.eq.s32.totalorder %s31, 3
      %p215 = por %p213, %p214
      %p216 = scmp.ne.s32.totalorder %s207, %s208
      %p217 = scmp.eq.s32.totalorder %s31, 0
      %p218 = por %p216, %p217
      %p219 = scmp.ne.s32.totalorder %s207, %s208
      %p220 = scmp.eq.s32.totalorder %s32, 3
      %p221 = por %p219, %p220
      %p223 = scmp.ne.s32.totalorder %s208, %s222
      %p224 = scmp.eq.s32.totalorder %s32, 0
      %p225 = por %p223, %p224
      %s226 = ssub.s32 %s33, %s45
      %p227 = scmp.eq.s32.totalorder %s226, 0
      %s229 = sadd.s32 %s228, 1
      %s230 = scalar_select %p227, %s228, %s229
      %p233 = pneg %p227
      %p234 = scmp.eq.s32.totalorder %s26, 3
      %p235 = por %p233, %p234
      %p236 = scmp.ne.s32.totalorder %s228, %s231
      %p237 = scmp.eq.s32.totalorder %s26, 0
      %p238 = por %p236, %p237
      %p239 = scmp.ne.s32.totalorder %s228, %s231
      %p240 = scmp.eq.s32.totalorder %s31, 3
      %p241 = por %p239, %p240
      %p242 = scmp.ne.s32.totalorder %s231, %s232
      %p243 = scmp.eq.s32.totalorder %s31, 0
      %p244 = por %p242, %p243
      %p245 = scmp.ne.s32.totalorder %s231, %s232
      %p246 = scmp.eq.s32.totalorder %s32, 3
      %p247 = por %p245, %p246
      %p249 = scmp.ne.s32.totalorder %s232, %s248
      %p250 = scmp.eq.s32.totalorder %s32, 0
      %p251 = por %p249, %p250
      %s253 = sadd.s32 %s252, 1
      %p256 = scmp.eq.s32.totalorder %s26, 3
      %p257 = scmp.ne.s32.totalorder %s252, %s254
      %p258 = scmp.eq.s32.totalorder %s26, 0
      %p259 = por %p257, %p258
      %p260 = scmp.ne.s32.totalorder %s252, %s254
      %p261 = scmp.eq.s32.totalorder %s31, 3
      %p262 = por %p260, %p261
      %p263 = scmp.ne.s32.totalorder %s254, %s255
      %p264 = scmp.eq.s32.totalorder %s31, 0
      %p265 = por %p263, %p264
      %p266 = scmp.ne.s32.totalorder %s254, %s255
      %p267 = scmp.eq.s32.totalorder %s32, 3
      %p268 = por %p266, %p267
      %p270 = scmp.ne.s32.totalorder %s255, %s269
      %p271 = scmp.eq.s32.totalorder %s32, 0
      %p272 = por %p270, %p271
      %s273 = ssub.s32 %s33, %s45
      %p274 = scmp.eq.s32.totalorder %s273, 0
      %s276 = sadd.s32 %s275, 1
      %s277 = scalar_select %p274, %s275, %s276
      %p280 = pneg %p274
      %p281 = scmp.eq.s32.totalorder %s26, 3
      %p282 = por %p280, %p281
      %p283 = scmp.ne.s32.totalorder %s275, %s278
      %p284 = scmp.eq.s32.totalorder %s26, 0
      %p285 = por %p283, %p284
      %p286 = scmp.ne.s32.totalorder %s275, %s278
      %p287 = scmp.eq.s32.totalorder %s31, 3
      %p288 = por %p286, %p287
      %p289 = scmp.ne.s32.totalorder %s278, %s279
      %p290 = scmp.eq.s32.totalorder %s31, 0
      %p291 = por %p289, %p290
      %p292 = scmp.ne.s32.totalorder %s278, %s279
      %p293 = scmp.eq.s32.totalorder %s32, 3
      %p294 = por %p292, %p293
      %p296 = scmp.ne.s32.totalorder %s279, %s295
      %p297 = scmp.eq.s32.totalorder %s32, 0
      %p298 = por %p296, %p297
      %p299 = scmp.le.s32.totalorder 1, %s26
      %p300 = scmp.lt.s32.totalorder %s26, 5
      %p301 = pnand %p299, %p300
      %p302 = pneg %p301
      // Predicated region
      $region9: #{tpu_custom_call.1} parent=5 // pred_check
        _
      $region10: #{tpu_custom_call.1} parent=5 // pred_check_branch
        %304 = sbr.rel (%p301) target = $region12
      $region11: #{tpu_custom_call.1} parent=5 // pred_region
        %s305 = ssub.s32 %s26, 1
        // Predicated region
        $region13: #{tpu_custom_call.1} parent=11 // pred_check
          %p306 = pneg %p59
        $region14: #{tpu_custom_call.1} parent=11 // pred_check_branch
          %308 = sbr.rel (%p306) target = $region16
        $region15: #{tpu_custom_call.1} parent=11 // pred_region
          %310 = vsyncadd [#allocation5], 0
          %s312 = sshll.u32 %s0, 4
          %s313 = int_to_ptr.hbm [resolvable:$true] %s312
          %s314 = sshll.u32 [#allocation4], 4
          %s315 = int_to_ptr.vmem [resolvable:$true] %s314
          %317 = dma.hbm_to_vmem [thread:$0]  %s313, 32, %s315, [#allocation5]
        $region16: #{tpu_custom_call.1} parent=11 // pred_fallthru
          _
        // Predicated region
        $region17: #{tpu_custom_call.1} parent=11 // pred_check
          %p318 = pneg %p134
        $region18: #{tpu_custom_call.1} parent=11 // pred_check_branch
          %320 = sbr.rel (%p318) target = $region20
        $region19: #{tpu_custom_call.1} parent=11 // pred_region
          _
        $region20: #{tpu_custom_call.1} parent=11 // pred_fallthru
          _
        // Predicated region
        $region21: #{tpu_custom_call.1} parent=11 // pred_check
          %p321 = pneg %p155
        $region22: #{tpu_custom_call.1} parent=11 // pred_check_branch
          %323 = sbr.rel (%p321) target = $region24
        $region23: #{tpu_custom_call.1} parent=11 // pred_region
          %325 = vsyncadd [#allocation10], 0
          %s326 = sshll.u32 %s4, 4
          %s327 = int_to_ptr.hbm [resolvable:$true] %s326
          %s328 = sshll.u32 [#allocation9], 4
          %s329 = int_to_ptr.vmem [resolvable:$true] %s328
          %334 = dma.hbm_to_vmem [thread:$0]  %s327, 1024, %s329, [#allocation10], 64, 64, 4
        $region24: #{tpu_custom_call.1} parent=11 // pred_fallthru
          _
        // Predicated region
        $region25: #{tpu_custom_call.1} parent=11 // pred_check
          %p335 = pneg %p176
        $region26: #{tpu_custom_call.1} parent=11 // pred_check_branch
          %337 = sbr.rel (%p335) target = $region28
        $region27: #{tpu_custom_call.1} parent=11 // pred_region
          _
        $region28: #{tpu_custom_call.1} parent=11 // pred_fallthru
          _
        // Predicated region
        $region29: #{tpu_custom_call.1} parent=11 // pred_check
          %p338 = pneg %p197
        $region30: #{tpu_custom_call.1} parent=11 // pred_check_branch
          %340 = sbr.rel (%p338) target = $region32
        $region31: #{tpu_custom_call.1} parent=11 // pred_region
          %342 = vsyncadd [#allocation10], 0
          %s343 = sshll.u32 %s6, 4
          %s344 = int_to_ptr.hbm [resolvable:$true] %s343
          %s345 = sshll.u32 [#allocation11], 4
          %s346 = int_to_ptr.vmem [resolvable:$true] %s345
          %351 = dma.hbm_to_vmem [thread:$0]  %s344, 4096, %s346, [#allocation10], 256, 256, 16
        $region32: #{tpu_custom_call.1} parent=11 // pred_fallthru
          _
        // Predicated region
        $region33: #{tpu_custom_call.1} parent=11 // pred_check
          %p352 = pneg %p218
        $region34: #{tpu_custom_call.1} parent=11 // pred_check_branch
          %354 = sbr.rel (%p352) target = $region36
        $region35: #{tpu_custom_call.1} parent=11 // pred_region
          _
        $region36: #{tpu_custom_call.1} parent=11 // pred_fallthru
          _
        // Predicated region
        $region37: #{tpu_custom_call.1} parent=11 // pred_check
          %p355 = pneg %p265
        $region38: #{tpu_custom_call.1} parent=11 // pred_check_branch
          %357 = sbr.rel (%p355) target = $region40
        $region39: #{tpu_custom_call.1} parent=11 // pred_region
          _
        $region40: #{tpu_custom_call.1} parent=11 // pred_fallthru
          _
      $region12: #{tpu_custom_call.1} parent=5 // pred_fallthru
        _
      %p358 = scmp.lt.s32.totalorder %s26, 4
      // Predicated region
      $region41: #{tpu_custom_call.1} parent=5 // pred_check
        %p359 = pneg %p358
      $region42: #{tpu_custom_call.1} parent=5 // pred_check_branch
        %361 = sbr.rel (%p359) target = $region44
      $region43: #{tpu_custom_call.1} parent=5 // pred_region
        // Predicated region
        $region45: #{tpu_custom_call.1} parent=43 // pred_check
          %p362 = pneg %p81
        $region46: #{tpu_custom_call.1} parent=43 // pred_check_branch
          %364 = sbr.rel (%p362) target = $region48
        $region47: #{tpu_custom_call.1} parent=43 // pred_region
          %s365 = sand.u32 %s26, 1
          %s366 = scalar_lea.sflag [#allocation7], %s365
          %s367 = sand.u32 %s71, 1
          %s368 = smul.addr %s367, 320
          %s369 = scalar_lea.vmem [#allocation6], %s368
          %s370 = smul.u32 16, %s34
          %s371 = smul.u32 5, %s33
          %373 = vsyncadd %s366, 0
          %s374 = smul.addr %s370, 10
          %s375 = sadd.s32 %s371, %s374
          %s376 = smul.addr %s375, 4
          %s377 = scalar_lea.hbm %s1, %s376
          %s378 = sshll.u32 %s377, 4
          %s379 = int_to_ptr.hbm [resolvable:$true] %s378
          %s380 = sshll.u32 %s369, 4
          %s381 = int_to_ptr.vmem [resolvable:$true] %s380
          %386 = dma.hbm_to_vmem [thread:$0]  %s379, 5120, %s381, %s366, 640, 320, 20
        $region48: #{tpu_custom_call.1} parent=43 // pred_fallthru
          _
        // Predicated region
        $region49: #{tpu_custom_call.1} parent=43 // pred_check
          %p387 = pneg %p107
        $region50: #{tpu_custom_call.1} parent=43 // pred_check_branch
          %389 = sbr.rel (%p387) target = $region52
        $region51: #{tpu_custom_call.1} parent=43 // pred_region
          %s390 = sand.u32 %s26, 1
          %s391 = scalar_lea.sflag [#allocation7], %s390
          %s392 = sand.u32 %s97, 1
          %s393 = smul.addr %s392, 5
          %s394 = scalar_lea.vmem [#allocation8], %s393
          %s395 = smul.u32 5, %s33
          %397 = vsyncadd %s391, 0
          %s398 = scalar_lea.hbm %s2, %s395
          %s400 = sshll.u32 %s398, 4
          %s401 = int_to_ptr.hbm [resolvable:$true] %s400
          %s402 = sshll.u32 %s394, 4
          %s403 = int_to_ptr.vmem [resolvable:$true] %s402
          %405 = dma.hbm_to_vmem [thread:$0]  %s401, 80, %s403, %s391
        $region52: #{tpu_custom_call.1} parent=43 // pred_fallthru
          _
        // Predicated region
        $region53: #{tpu_custom_call.1} parent=43 // pred_check
          %p406 = pneg %p238
        $region54: #{tpu_custom_call.1} parent=43 // pred_check_branch
          %408 = sbr.rel (%p406) target = $region56
        $region55: #{tpu_custom_call.1} parent=43 // pred_region
          %s409 = sand.u32 %s228, 1
          %s410 = scalar_lea.sflag [#allocation13], %s409
          %s411 = sand.u32 %s228, 1
          %s412 = smul.addr %s411, 5
          %s413 = scalar_lea.vmem [#allocation12], %s412
          %s414 = smul.u32 5, %s33
          %416 = vsyncadd %s410, 0
          %s417 = scalar_lea.hbm %s8, %s414
          %s419 = sshll.u32 %s417, 4
          %s420 = int_to_ptr.hbm [resolvable:$true] %s419
          %s421 = sshll.u32 %s413, 4
          %s422 = int_to_ptr.vmem [resolvable:$true] %s421
          %424 = dma.hbm_to_vmem [thread:$0]  %s420, 80, %s422, %s410
        $region56: #{tpu_custom_call.1} parent=43 // pred_fallthru
          _
      $region44: #{tpu_custom_call.1} parent=5 // pred_fallthru
        _
      %p425 = scmp.le.s32.totalorder 1, %s26
      %p426 = scmp.lt.s32.totalorder %s26, 5
      %p427 = pnand %p425, %p426
      %p428 = pneg %p427
      // Predicated region
      $region57: #{tpu_custom_call.1} parent=5 // pred_check
        _
      $region58: #{tpu_custom_call.1} parent=5 // pred_check_branch
        %430 = sbr.rel (%p427) target = $region60
      $region59: #{tpu_custom_call.1} parent=5 // pred_region
        %s431 = ssub.s32 %s26, 1
        // Predicated region
        $region61: #{tpu_custom_call.1} parent=59 // pred_check
          %p432 = pneg %p59
        $region62: #{tpu_custom_call.1} parent=59 // pred_check_branch
          %434 = sbr.rel (%p432) target = $region64
        $region63: #{tpu_custom_call.1} parent=59 // pred_region
          %436 = dma.done [#allocation5], 32
        $region64: #{tpu_custom_call.1} parent=59 // pred_fallthru
          _
        %s437 = sand.u32 %s31, 1
        %s438 = scalar_lea.sflag [#allocation7], %s437
        %s439 = sand.u32 %s74, 1
        %s440 = smul.addr %s439, 320
        %s441 = scalar_lea.vmem [#allocation6], %s440
        // Predicated region
        $region65: #{tpu_custom_call.1} parent=59 // pred_check
          %p442 = pneg %p87
        $region66: #{tpu_custom_call.1} parent=59 // pred_check_branch
          %444 = sbr.rel (%p442) target = $region68
        $region67: #{tpu_custom_call.1} parent=59 // pred_region
          %446 = dma.done %s438, 5120
        $region68: #{tpu_custom_call.1} parent=59 // pred_fallthru
          _
        %s447 = sand.u32 %s31, 1
        %s448 = scalar_lea.sflag [#allocation7], %s447
        %s449 = sand.u32 %s100, 1
        %s450 = smul.addr %s449, 5
        %s451 = scalar_lea.vmem [#allocation8], %s450
        // Predicated region
        $region69: #{tpu_custom_call.1} parent=59 // pred_check
          %p452 = pneg %p113
        $region70: #{tpu_custom_call.1} parent=59 // pred_check_branch
          %454 = sbr.rel (%p452) target = $region72
        $region71: #{tpu_custom_call.1} parent=59 // pred_region
          %456 = dma.done %s448, 80
        $region72: #{tpu_custom_call.1} parent=59 // pred_fallthru
          _
        // Predicated region
        $region73: #{tpu_custom_call.1} parent=59 // pred_check
          %p457 = pneg %p155
        $region74: #{tpu_custom_call.1} parent=59 // pred_check_branch
          %459 = sbr.rel (%p457) target = $region76
        $region75: #{tpu_custom_call.1} parent=59 // pred_region
          %461 = dma.done [#allocation10], 1024
        $region76: #{tpu_custom_call.1} parent=59 // pred_fallthru
          _
        // Predicated region
        $region77: #{tpu_custom_call.1} parent=59 // pred_check
          %p462 = pneg %p197
        $region78: #{tpu_custom_call.1} parent=59 // pred_check_branch
          %464 = sbr.rel (%p462) target = $region80
        $region79: #{tpu_custom_call.1} parent=59 // pred_region
          %466 = dma.done [#allocation10], 4096
        $region80: #{tpu_custom_call.1} parent=59 // pred_fallthru
          _
        %s467 = sand.u32 %s231, 1
        %s468 = scalar_lea.sflag [#allocation13], %s467
        %s469 = sand.u32 %s231, 1
        %s470 = smul.addr %s469, 5
        %s471 = scalar_lea.vmem [#allocation12], %s470
        // Predicated region
        $region81: #{tpu_custom_call.1} parent=59 // pred_check
          %p472 = pneg %p244
        $region82: #{tpu_custom_call.1} parent=59 // pred_check_branch
          %474 = sbr.rel (%p472) target = $region84
        $region83: #{tpu_custom_call.1} parent=59 // pred_region
          %476 = dma.done %s468, 80
        $region84: #{tpu_custom_call.1} parent=59 // pred_fallthru
          _
        %p477 = pneg %p59
        %p478 = pneg %p56
        %s479 = sand.u32 %s31, 1
        %s480 = scalar_lea.sflag [#allocation7], %s479
        %s481 = sand.u32 %s74, 1
        %s482 = smul.addr %s481, 320
        %s483 = scalar_lea.vmem [#allocation6], %s482
        %p484 = pneg %p87
        %p485 = pneg %p84
        %s486 = sand.u32 %s31, 1
        %s487 = scalar_lea.sflag [#allocation7], %s486
        %s488 = sand.u32 %s100, 1
        %s489 = smul.addr %s488, 5
        %s490 = scalar_lea.vmem [#allocation8], %s489
        %p491 = pneg %p113
        %p492 = pneg %p110
        %p493 = pneg %p134
        %p494 = pneg %p131
        %p495 = pneg %p155
        %p496 = pneg %p152
        %p497 = pneg %p176
        %p498 = pneg %p173
        %p499 = pneg %p197
        %p500 = pneg %p194
        %p501 = pneg %p218
        %p502 = pneg %p215
        %s503 = sand.u32 %s231, 1
        %s504 = scalar_lea.sflag [#allocation13], %s503
        %s505 = sand.u32 %s231, 1
        %s506 = smul.addr %s505, 5
        %s507 = scalar_lea.vmem [#allocation12], %s506
        %p508 = pneg %p244
        %p509 = pneg %p241
        %p510 = pneg %p265
        %p511 = pneg %p262
        %p512 = pneg %p291
        %p513 = pneg %p288
        %p514 = scmp.lt.s32.totalorder %s35, 1
        %s515 = scalar_select %p514, %s35, 1
        %s516 = smul.addr %s515, 2
        %s517 = scalar_lea.vmem %s10, %s516
        %s518 = smul.u32 16, %s36
        %s519 = smul.u32 5, %s35
        %s520 = smul.u32 5, %s35
        %s521 = smul.u32 5, %s35
        %p522 = scmp.lt.s32.totalorder %s35, 1
        %s523 = scalar_select %p522, %s35, 1
        %s524 = smul.addr %s523, 2
        %s525 = scalar_lea.vmem %s10, %s524
        %p526 = scmp.eq.s32.totalorder %s36, 0
        // Predicated region
        $region85: #{tpu_custom_call.1} parent=59 // pred_check
          %p527 = pneg %p526
        $region86: #{tpu_custom_call.1} parent=59 // pred_check_branch
          %529 = sbr.rel (%p527) target = $region88
        $region87: #{tpu_custom_call.1} parent=59 // pred_region
          %530 = vst [vmem:[#allocation2] sm:$0xff] 0.0
          %531 = vst [vmem:[#allocation2 + $0x8] sm:$0x3] 0.0
        $region88: #{tpu_custom_call.1} parent=59 // pred_fallthru
          _
        %s532 = smul.u32 %s36, 128
        %s533 = sshra.s32 %s532, 7
        %s534 = sand.u32 %s532, 127
        %s535 = scalar_lea.vmem [#allocation4], %s533
        %v536 = vld [vmem:[%s535] sm:$0x1]
        %v537 = vld [vmem:[#allocation2] sm:$0xff]
        %v538 = vld [vmem:[#allocation2 + $0x8] sm:$0x3]
        %v539 = vld [vmem:[%s441] sm:$0xff]
        %v540 = vld [vmem:[%s441 + $0x8] sm:$0xff]
        %v541 = vld [vmem:[%s441 + $0x10] sm:$0xf]
        %v542 = vld [vmem:[%s441 + $0x14] sm:$0xff]
        %v543 = vld [vmem:[%s441 + $0x1c] sm:$0xff]
        %v544 = vld [vmem:[%s441 + $0x24] sm:$0xf]
        %v545 = vld [vmem:[%s441 + $0x28] sm:$0xff]
        %v546 = vld [vmem:[%s441 + $0x30] sm:$0xff]
        %v547 = vld [vmem:[%s441 + $0x38] sm:$0xf]
        %v548 = vld [vmem:[%s441 + $0x3c] sm:$0xff]
        %v549 = vld [vmem:[%s441 + $0x44] sm:$0xff]
        %v550 = vld [vmem:[%s441 + $0x4c] sm:$0xf]
        %v551 = vld [vmem:[%s441 + $0x50] sm:$0xff]
        %v552 = vld [vmem:[%s441 + $0x58] sm:$0xff]
        %v553 = vld [vmem:[%s441 + $0x60] sm:$0xf]
        %v554 = vld [vmem:[%s441 + $0x64] sm:$0xff]
        %v555 = vld [vmem:[%s441 + $0x6c] sm:$0xff]
        %v556 = vld [vmem:[%s441 + $0x74] sm:$0xf]
        %v557 = vld [vmem:[%s441 + $0x78] sm:$0xff]
        %v558 = vld [vmem:[%s441 + $0x80] sm:$0xff]
        %v559 = vld [vmem:[%s441 + $0x88] sm:$0xf]
        %v560 = vld [vmem:[%s441 + $0x8c] sm:$0xff]
        %v561 = vld [vmem:[%s441 + $0x94] sm:$0xff]
        %v562 = vld [vmem:[%s441 + $0x9c] sm:$0xf]
        %v563 = vld [vmem:[%s441 + $0xa0] sm:$0xff]
        %v564 = vld [vmem:[%s441 + $0xa8] sm:$0xff]
        %v565 = vld [vmem:[%s441 + $0xb0] sm:$0xf]
        %v566 = vld [vmem:[%s441 + $0xb4] sm:$0xff]
        %v567 = vld [vmem:[%s441 + $0xbc] sm:$0xff]
        %v568 = vld [vmem:[%s441 + $0xc4] sm:$0xf]
        %v569 = vld [vmem:[%s441 + $0xc8] sm:$0xff]
        %v570 = vld [vmem:[%s441 + $0xd0] sm:$0xff]
        %v571 = vld [vmem:[%s441 + $0xd8] sm:$0xf]
        %v572 = vld [vmem:[%s441 + $0xdc] sm:$0xff]
        %v573 = vld [vmem:[%s441 + $0xe4] sm:$0xff]
        %v574 = vld [vmem:[%s441 + $0xec] sm:$0xf]
        %v575 = vld [vmem:[%s441 + $0xf0] sm:$0xff]
        %v576 = vld [vmem:[%s441 + $0xf8] sm:$0xff]
        %v577 = vld [vmem:[%s441 + $0x100] sm:$0xf]
        %v578 = vld [vmem:[%s441 + $0x104] sm:$0xff]
        %v579 = vld [vmem:[%s441 + $0x10c] sm:$0xff]
        %v580 = vld [vmem:[%s441 + $0x114] sm:$0xf]
        %v581 = vld [vmem:[%s441 + $0x118] sm:$0xff]
        %v582 = vld [vmem:[%s441 + $0x120] sm:$0xff]
        %v583 = vld [vmem:[%s441 + $0x128] sm:$0xf]
        %v584 = vld [vmem:[%s441 + $0x12c] sm:$0xff]
        %v585 = vld [vmem:[%s441 + $0x134] sm:$0xff]
        %v586 = vld [vmem:[%s441 + $0x13c] sm:$0xf]
        %v635 = vunpack.c.l.b16 %v539
        %v636 = vunpack.c.h.b16 %v539
        %v637 = vunpack.c.l.b16 %v540
        %v638 = vunpack.c.h.b16 %v540
        %v639 = vunpack.c.l.b16 %v541
        %v640 = vunpack.c.l.b16 %v542
        %v641 = vunpack.c.h.b16 %v542
        %v642 = vunpack.c.l.b16 %v543
        %v643 = vunpack.c.h.b16 %v543
        %v644 = vunpack.c.l.b16 %v544
        %v645 = vunpack.c.l.b16 %v545
        %v646 = vunpack.c.h.b16 %v545
        %v647 = vunpack.c.l.b16 %v546
        %v648 = vunpack.c.h.b16 %v546
        %v649 = vunpack.c.l.b16 %v547
        %v650 = vunpack.c.l.b16 %v548
        %v651 = vunpack.c.h.b16 %v548
        %v652 = vunpack.c.l.b16 %v549
        %v653 = vunpack.c.h.b16 %v549
        %v654 = vunpack.c.l.b16 %v550
        %v655 = vunpack.c.l.b16 %v551
        %v656 = vunpack.c.h.b16 %v551
        %v657 = vunpack.c.l.b16 %v552
        %v658 = vunpack.c.h.b16 %v552
        %v659 = vunpack.c.l.b16 %v553
        %v660 = vunpack.c.l.b16 %v554
        %v661 = vunpack.c.h.b16 %v554
        %v662 = vunpack.c.l.b16 %v555
        %v663 = vunpack.c.h.b16 %v555
        %v664 = vunpack.c.l.b16 %v556
        %v665 = vunpack.c.l.b16 %v557
        %v666 = vunpack.c.h.b16 %v557
        %v667 = vunpack.c.l.b16 %v558
        %v668 = vunpack.c.h.b16 %v558
        %v669 = vunpack.c.l.b16 %v559
        %v670 = vunpack.c.l.b16 %v560
        %v671 = vunpack.c.h.b16 %v560
        %v672 = vunpack.c.l.b16 %v561
        %v673 = vunpack.c.h.b16 %v561
        %v674 = vunpack.c.l.b16 %v562
        %v675 = vunpack.c.l.b16 %v563
        %v676 = vunpack.c.h.b16 %v563
        %v677 = vunpack.c.l.b16 %v564
        %v678 = vunpack.c.h.b16 %v564
        %v679 = vunpack.c.l.b16 %v565
        %v680 = vunpack.c.l.b16 %v566
        %v681 = vunpack.c.h.b16 %v566
        %v682 = vunpack.c.l.b16 %v567
        %v683 = vunpack.c.h.b16 %v567
        %v684 = vunpack.c.l.b16 %v568
        %v685 = vunpack.c.l.b16 %v569
        %v686 = vunpack.c.h.b16 %v569
        %v687 = vunpack.c.l.b16 %v570
        %v688 = vunpack.c.h.b16 %v570
        %v689 = vunpack.c.l.b16 %v571
        %v690 = vunpack.c.l.b16 %v572
        %v691 = vunpack.c.h.b16 %v572
        %v692 = vunpack.c.l.b16 %v573
        %v693 = vunpack.c.h.b16 %v573
        %v694 = vunpack.c.l.b16 %v574
        %v695 = vunpack.c.l.b16 %v575
        %v696 = vunpack.c.h.b16 %v575
        %v697 = vunpack.c.l.b16 %v576
        %v698 = vunpack.c.h.b16 %v576
        %v699 = vunpack.c.l.b16 %v577
        %v700 = vunpack.c.l.b16 %v578
        %v701 = vunpack.c.h.b16 %v578
        %v702 = vunpack.c.l.b16 %v579
        %v703 = vunpack.c.h.b16 %v579
        %v704 = vunpack.c.l.b16 %v580
        %v705 = vunpack.c.l.b16 %v581
        %v706 = vunpack.c.h.b16 %v581
        %v707 = vunpack.c.l.b16 %v582
        %v708 = vunpack.c.h.b16 %v582
        %v709 = vunpack.c.l.b16 %v583
        %v710 = vunpack.c.l.b16 %v584
        %v711 = vunpack.c.h.b16 %v584
        %v712 = vunpack.c.l.b16 %v585
        %v713 = vunpack.c.h.b16 %v585
        %v714 = vunpack.c.l.b16 %v586
        %v715 = vpack.c.b16 %v640, %v635
        %v716 = vpack.c.b16 %v641, %v636
        %v717 = vpack.c.b16 %v642, %v637
        %v718 = vpack.c.b16 %v643, %v638
        %v719 = vpack.c.b16 %v644, %v639
        %v720 = vpack.c.b16 %v650, %v645
        %v721 = vpack.c.b16 %v651, %v646
        %v722 = vpack.c.b16 %v652, %v647
        %v723 = vpack.c.b16 %v653, %v648
        %v724 = vpack.c.b16 %v654, %v649
        %v725 = vpack.c.b16 %v660, %v655
        %v726 = vpack.c.b16 %v661, %v656
        %v727 = vpack.c.b16 %v662, %v657
        %v728 = vpack.c.b16 %v663, %v658
        %v729 = vpack.c.b16 %v664, %v659
        %v730 = vpack.c.b16 %v670, %v665
        %v731 = vpack.c.b16 %v671, %v666
        %v732 = vpack.c.b16 %v672, %v667
        %v733 = vpack.c.b16 %v673, %v668
        %v734 = vpack.c.b16 %v674, %v669
        %v735 = vpack.c.b16 %v680, %v675
        %v736 = vpack.c.b16 %v681, %v676
        %v737 = vpack.c.b16 %v682, %v677
        %v738 = vpack.c.b16 %v683, %v678
        %v739 = vpack.c.b16 %v684, %v679
        %v740 = vpack.c.b16 %v690, %v685
        %v741 = vpack.c.b16 %v691, %v686
        %v742 = vpack.c.b16 %v692, %v687
        %v743 = vpack.c.b16 %v693, %v688
        %v744 = vpack.c.b16 %v694, %v689
        %v745 = vpack.c.b16 %v700, %v695
        %v746 = vpack.c.b16 %v701, %v696
        %v747 = vpack.c.b16 %v702, %v697
        %v748 = vpack.c.b16 %v703, %v698
        %v749 = vpack.c.b16 %v704, %v699
        %v750 = vpack.c.b16 %v710, %v705
        %v751 = vpack.c.b16 %v711, %v706
        %v752 = vpack.c.b16 %v712, %v707
        %v753 = vpack.c.b16 %v713, %v708
        %v754 = vpack.c.b16 %v714, %v709
        %795 = vmatpush.bf16.msra.mxu0 %v750
        %796 = vmatpush.bf16.msra.mxu0 %v745
        %797 = vmatpush.bf16.msra.mxu0 %v740
        %798 = vmatpush.bf16.msra.mxu0 %v735
        %799 = vmatpush.bf16.msra.mxu0 %v730
        %800 = vmatpush.bf16.msra.mxu0 %v725
        %801 = vmatpush.bf16.msra.mxu0 %v720
        %802 = vmatpush.bf16.msra.mxu0 %v715
        %803 = vmatmul.bf16.gmra.mxu0 %v536
        %v804 = vpop.f32.mrf.mxu0
        %v805 = vadd.f32 0.0, %v804
        %v806 = vpop.f32.mrf.mxu0
        %807 = vdwg.mxu0
        %808 = vmatpush.bf16.msra.mxu0 %v751
        %809 = vmatpush.bf16.msra.mxu0 %v746
        %810 = vmatpush.bf16.msra.mxu0 %v741
        %811 = vmatpush.bf16.msra.mxu0 %v736
        %812 = vmatpush.bf16.msra.mxu0 %v731
        %813 = vmatpush.bf16.msra.mxu0 %v726
        %814 = vmatpush.bf16.msra.mxu0 %v721
        %815 = vmatpush.bf16.msra.mxu0 %v716
        %816 = vmatmul.bf16.gmra.mxu0 %v536
        %v817 = vpop.f32.mrf.mxu0
        %v818 = vadd.f32 0.0, %v817
        %v819 = vpop.f32.mrf.mxu0
        %820 = vdwg.mxu0
        %821 = vmatpush.bf16.msra.mxu0 %v752
        %822 = vmatpush.bf16.msra.mxu0 %v747
        %823 = vmatpush.bf16.msra.mxu0 %v742
        %824 = vmatpush.bf16.msra.mxu0 %v737
        %825 = vmatpush.bf16.msra.mxu0 %v732
        %826 = vmatpush.bf16.msra.mxu0 %v727
        %827 = vmatpush.bf16.msra.mxu0 %v722
        %828 = vmatpush.bf16.msra.mxu0 %v717
        %829 = vmatmul.bf16.gmra.mxu0 %v536
        %v830 = vpop.f32.mrf.mxu0
        %v831 = vadd.f32 0.0, %v830
        %v832 = vpop.f32.mrf.mxu0
        %833 = vdwg.mxu0
        %834 = vmatpush.bf16.msra.mxu0 %v753
        %835 = vmatpush.bf16.msra.mxu0 %v748
        %836 = vmatpush.bf16.msra.mxu0 %v743
        %837 = vmatpush.bf16.msra.mxu0 %v738
        %838 = vmatpush.bf16.msra.mxu0 %v733
        %839 = vmatpush.bf16.msra.mxu0 %v728
        %840 = vmatpush.bf16.msra.mxu0 %v723
        %841 = vmatpush.bf16.msra.mxu0 %v718
        %842 = vmatmul.bf16.gmra.mxu0 %v536
        %v843 = vpop.f32.mrf.mxu0
        %v844 = vadd.f32 0.0, %v843
        %v845 = vpop.f32.mrf.mxu0
        %846 = vdwg.mxu0
        %847 = vmatpush.bf16.msra.mxu0 %v754
        %848 = vmatpush.bf16.msra.mxu0 %v749
        %849 = vmatpush.bf16.msra.mxu0 %v744
        %850 = vmatpush.bf16.msra.mxu0 %v739
        %851 = vmatpush.bf16.msra.mxu0 %v734
        %852 = vmatpush.bf16.msra.mxu0 %v729
        %853 = vmatpush.bf16.msra.mxu0 %v724
        %854 = vmatpush.bf16.msra.mxu0 %v719
        %855 = vmatmul.bf16.gmra.mxu0 %v536
        %v856 = vpop.f32.mrf.mxu0
        %v857 = vadd.f32 0.0, %v856
        %v858 = vpop.f32.mrf.mxu0
        %859 = vdwg.mxu0
        %v864 = vrot.slane %v818, 6
        %v865 = vrot.slane %v831, 4
        %v866 = vrot.slane %v844, 2
        %vm867 = vcmask 1041408
        %v868 = vsel %vm867, %v805, %v864
        %vm869 = vcmask 1045508
        %v870 = vsel %vm869, %v865, %v866
        %vm871 = vcmask 1043456
        %v872 = vsel %vm871, %v868, %v870
        %v874 = vadd.f32 %v537, %v872
        %v875 = vadd.f32 %v538, %v857
        %876 = vst [vmem:[#allocation2] sm:$0xff] %v874
        %877 = vst [vmem:[#allocation2 + $0x8] sm:$0x3] %v875
        %p878 = scmp.eq.s32.totalorder %s36, 1
        // Predicated region
        $region89: #{tpu_custom_call.1} parent=59 // pred_check
          %p879 = pneg %p878
        $region90: #{tpu_custom_call.1} parent=59 // pred_check_branch
          %881 = sbr.rel (%p879) target = $region92
        $region91: #{tpu_custom_call.1} parent=59 // pred_region
          %v882 = vld [vmem:[#allocation2] sm:$0xff]
          %v883 = vld [vmem:[#allocation2 + $0x8] sm:$0x3]
          %v884 = vld [vmem:[%s451] sm:$0x1f]
          %v886 = vperm.slane %v884, 0
          %v887 = vperm.slane %v884, 1
          %v888 = vperm.slane %v884, 2
          %v889 = vperm.slane %v884, 3
          %v890 = vperm.slane %v884, 4
          %v892 = vrot.slane %v887, 6
          %v893 = vrot.slane %v888, 4
          %v894 = vrot.slane %v889, 2
          %v895 = vsel %vm867, %v886, %v892
          %v896 = vsel %vm869, %v893, %v894
          %v897 = vsel %vm871, %v895, %v896
          %v899 = vadd.f32 %v882, %v897
          %v900 = vadd.f32 %v883, %v890
          %v901 = vmax.f32 %v899, 0.0
          %v902 = vmax.f32 %v900, 0.0
          %v903 = vld [vmem:[%s471] sm:$0x1f]
          %v905 = vperm.slane %v903, 0
          %v906 = vperm.slane %v903, 1
          %v907 = vperm.slane %v903, 2
          %v908 = vperm.slane %v903, 3
          %v909 = vperm.slane %v903, 4
          %v911 = vrot.slane %v906, 6
          %v912 = vrot.slane %v907, 4
          %v913 = vrot.slane %v908, 2
          %v914 = vsel %vm867, %v905, %v911
          %v915 = vsel %vm869, %v912, %v913
          %v916 = vsel %vm871, %v914, %v915
          %v918 = vmul.f32 %v901, %v916
          %v919 = vmul.f32 %v902, %v909
          %922 = vst [vmem:[#allocation1] ss:$4 sm:$0xff] %v918
          %s923 = scalar_lea.vmem [#allocation1], 32
          %924 = vst [vmem:[%s923] ss:$4 sm:$0xff] %v919
          %v925 = vld.sshfl [vmem:[#allocation1] sm:$0xff pattern:$0x73625140]
          %v926 = vld.sshfl [vmem:[#allocation1 + $0x8] sm:$0xff pattern:$0x73625140]
          %v927 = vld.sshfl [vmem:[#allocation1 + $0x10] sm:$0xff pattern:$0x73625140]
          %v928 = vld.sshfl [vmem:[#allocation1 + $0x18] sm:$0xff pattern:$0x73625140]
          %v929 = vld.sshfl [vmem:[#allocation1 + $0x20] sm:$0xff pattern:$0x73625140]
          %v935 = vsel %vm867, %v925, 0.0
          %v936 = vsel %vm867, %v926, 0.0
          %v937 = vadd.f32 %v935, %v936
          %v938 = vsel %vm867, %v927, 0.0
          %v939 = vadd.f32 %v937, %v938
          %v940 = vsel %vm867, %v928, 0.0
          %v941 = vadd.f32 %v939, %v940
          %v942 = vsel %vm867, %v929, 0.0
          %v943 = vadd.f32 %v941, %v942
          %944 = vadd.xlane.f32.xlu0 %v943
          %v945 = vpop.xlane.xlu0 %944
          %p946 = scmp.eq.s32.totalorder %s35, 0
          // Predicated region
          $region93: #{tpu_custom_call.1} parent=91 // pred_check
            %p947 = pneg %p946
          $region94: #{tpu_custom_call.1} parent=91 // pred_check_branch
            %949 = sbr.rel (%p947) target = $region96
          $region95: #{tpu_custom_call.1} parent=91 // pred_region
            %v950 = vld [vmem:[%s3] sm:$0x1]
            %v951 = vld [vmem:[#allocation9] sm:$0xf]
            %v952 = vld [vmem:[#allocation9 + $0x4] sm:$0xf]
            %v953 = vld [vmem:[#allocation9 + $0x8] sm:$0xf]
            %v954 = vld [vmem:[#allocation9 + $0xc] sm:$0xf]
            %v955 = vld [vmem:[#allocation9 + $0x10] sm:$0xf]
            %v956 = vld [vmem:[#allocation9 + $0x14] sm:$0xf]
            %v957 = vld [vmem:[#allocation9 + $0x18] sm:$0xf]
            %v958 = vld [vmem:[#allocation9 + $0x1c] sm:$0xf]
            %v959 = vld [vmem:[#allocation9 + $0x20] sm:$0xf]
            %v960 = vld [vmem:[#allocation9 + $0x24] sm:$0xf]
            %v961 = vld [vmem:[#allocation9 + $0x28] sm:$0xf]
            %v962 = vld [vmem:[#allocation9 + $0x2c] sm:$0xf]
            %v963 = vld [vmem:[#allocation9 + $0x30] sm:$0xf]
            %v964 = vld [vmem:[#allocation9 + $0x34] sm:$0xf]
            %v965 = vld [vmem:[#allocation9 + $0x38] sm:$0xf]
            %v966 = vld [vmem:[#allocation9 + $0x3c] sm:$0xf]
            %v967 = vld [vmem:[%s5] sm:$0x1]
            %v969 = vperm.slane %v967, 0
            %v987 = vunpack.c.l.b16 %v951
            %v988 = vunpack.c.l.b16 %v952
            %v989 = vunpack.c.l.b16 %v953
            %v990 = vunpack.c.l.b16 %v954
            %v991 = vunpack.c.l.b16 %v955
            %v992 = vunpack.c.l.b16 %v956
            %v993 = vunpack.c.l.b16 %v957
            %v994 = vunpack.c.l.b16 %v958
            %v995 = vunpack.c.l.b16 %v959
            %v996 = vunpack.c.l.b16 %v960
            %v997 = vunpack.c.l.b16 %v961
            %v998 = vunpack.c.l.b16 %v962
            %v999 = vunpack.c.l.b16 %v963
            %v1000 = vunpack.c.l.b16 %v964
            %v1001 = vunpack.c.l.b16 %v965
            %v1002 = vunpack.c.l.b16 %v966
            %v1003 = vpack.c.b16 %v988, %v987
            %v1004 = vpack.c.b16 %v990, %v989
            %v1005 = vpack.c.b16 %v992, %v991
            %v1006 = vpack.c.b16 %v994, %v993
            %v1007 = vpack.c.b16 %v996, %v995
            %v1008 = vpack.c.b16 %v998, %v997
            %v1009 = vpack.c.b16 %v1000, %v999
            %v1010 = vpack.c.b16 %v1002, %v1001
            %1019 = vmatpush.bf16.msra.mxu0 %v1010
            %1020 = vmatpush.bf16.msra.mxu0 %v1009
            %1021 = vmatpush.bf16.msra.mxu0 %v1008
            %1022 = vmatpush.bf16.msra.mxu0 %v1007
            %1023 = vmatpush.bf16.msra.mxu0 %v1006
            %1024 = vmatpush.bf16.msra.mxu0 %v1005
            %1025 = vmatpush.bf16.msra.mxu0 %v1004
            %1026 = vmatpush.bf16.msra.mxu0 %v1003
            %1027 = vmatmul.bf16.gmra.mxu0 %v950
            %v1028 = vpop.f32.mrf.mxu0
            %v1029 = vadd.f32 %v969, %v1028
            %v1030 = vpop.f32.mrf.mxu0
            %1031 = vdwg.mxu0
            %v1032 = vmax.f32 %v1029, 0.0
            %v1033 = vpack.c.bf16 %v1032, %v1032
            %v1034 = vld [vmem:[#allocation11] sm:$0xff]
            %v1035 = vld [vmem:[#allocation11 + $0x8] sm:$0xff]
            %v1036 = vld [vmem:[#allocation11 + $0x10] sm:$0xff]
            %v1037 = vld [vmem:[#allocation11 + $0x18] sm:$0xff]
            %v1038 = vld [vmem:[#allocation11 + $0x20] sm:$0xff]
            %v1039 = vld [vmem:[#allocation11 + $0x28] sm:$0xff]
            %v1040 = vld [vmem:[#allocation11 + $0x30] sm:$0xff]
            %v1041 = vld [vmem:[#allocation11 + $0x38] sm:$0xff]
            %v1042 = vld [vmem:[#allocation11 + $0x40] sm:$0xff]
            %v1043 = vld [vmem:[#allocation11 + $0x48] sm:$0xff]
            %v1044 = vld [vmem:[#allocation11 + $0x50] sm:$0xff]
            %v1045 = vld [vmem:[#allocation11 + $0x58] sm:$0xff]
            %v1046 = vld [vmem:[#allocation11 + $0x60] sm:$0xff]
            %v1047 = vld [vmem:[#allocation11 + $0x68] sm:$0xff]
            %v1048 = vld [vmem:[#allocation11 + $0x70] sm:$0xff]
            %v1049 = vld [vmem:[#allocation11 + $0x78] sm:$0xff]
            %v1050 = vld [vmem:[#allocation11 + $0x80] sm:$0xff]
            %v1051 = vld [vmem:[#allocation11 + $0x88] sm:$0xff]
            %v1052 = vld [vmem:[#allocation11 + $0x90] sm:$0xff]
            %v1053 = vld [vmem:[#allocation11 + $0x98] sm:$0xff]
            %v1054 = vld [vmem:[#allocation11 + $0xa0] sm:$0xff]
            %v1055 = vld [vmem:[#allocation11 + $0xa8] sm:$0xff]
            %v1056 = vld [vmem:[#allocation11 + $0xb0] sm:$0xff]
            %v1057 = vld [vmem:[#allocation11 + $0xb8] sm:$0xff]
            %v1058 = vld [vmem:[#allocation11 + $0xc0] sm:$0xff]
            %v1059 = vld [vmem:[#allocation11 + $0xc8] sm:$0xff]
            %v1060 = vld [vmem:[#allocation11 + $0xd0] sm:$0xff]
            %v1061 = vld [vmem:[#allocation11 + $0xd8] sm:$0xff]
            %v1062 = vld [vmem:[#allocation11 + $0xe0] sm:$0xff]
            %v1063 = vld [vmem:[#allocation11 + $0xe8] sm:$0xff]
            %v1064 = vld [vmem:[#allocation11 + $0xf0] sm:$0xff]
            %v1065 = vld [vmem:[#allocation11 + $0xf8] sm:$0xff]
            %v1098 = vunpack.c.l.b16 %v1034
            %v1099 = vunpack.c.h.b16 %v1034
            %v1100 = vunpack.c.l.b16 %v1035
            %v1101 = vunpack.c.h.b16 %v1035
            %v1102 = vunpack.c.l.b16 %v1036
            %v1103 = vunpack.c.h.b16 %v1036
            %v1104 = vunpack.c.l.b16 %v1037
            %v1105 = vunpack.c.h.b16 %v1037
            %v1106 = vunpack.c.l.b16 %v1038
            %v1107 = vunpack.c.h.b16 %v1038
            %v1108 = vunpack.c.l.b16 %v1039
            %v1109 = vunpack.c.h.b16 %v1039
            %v1110 = vunpack.c.l.b16 %v1040
            %v1111 = vunpack.c.h.b16 %v1040
            %v1112 = vunpack.c.l.b16 %v1041
            %v1113 = vunpack.c.h.b16 %v1041
            %v1114 = vunpack.c.l.b16 %v1042
            %v1115 = vunpack.c.h.b16 %v1042
            %v1116 = vunpack.c.l.b16 %v1043
            %v1117 = vunpack.c.h.b16 %v1043
            %v1118 = vunpack.c.l.b16 %v1044
            %v1119 = vunpack.c.h.b16 %v1044
            %v1120 = vunpack.c.l.b16 %v1045
            %v1121 = vunpack.c.h.b16 %v1045
            %v1122 = vunpack.c.l.b16 %v1046
            %v1123 = vunpack.c.h.b16 %v1046
            %v1124 = vunpack.c.l.b16 %v1047
            %v1125 = vunpack.c.h.b16 %v1047
            %v1126 = vunpack.c.l.b16 %v1048
            %v1127 = vunpack.c.h.b16 %v1048
            %v1128 = vunpack.c.l.b16 %v1049
            %v1129 = vunpack.c.h.b16 %v1049
            %v1130 = vunpack.c.l.b16 %v1050
            %v1131 = vunpack.c.h.b16 %v1050
            %v1132 = vunpack.c.l.b16 %v1051
            %v1133 = vunpack.c.h.b16 %v1051
            %v1134 = vunpack.c.l.b16 %v1052
            %v1135 = vunpack.c.h.b16 %v1052
            %v1136 = vunpack.c.l.b16 %v1053
            %v1137 = vunpack.c.h.b16 %v1053
            %v1138 = vunpack.c.l.b16 %v1054
            %v1139 = vunpack.c.h.b16 %v1054
            %v1140 = vunpack.c.l.b16 %v1055
            %v1141 = vunpack.c.h.b16 %v1055
            %v1142 = vunpack.c.l.b16 %v1056
            %v1143 = vunpack.c.h.b16 %v1056
            %v1144 = vunpack.c.l.b16 %v1057
            %v1145 = vunpack.c.h.b16 %v1057
            %v1146 = vunpack.c.l.b16 %v1058
            %v1147 = vunpack.c.h.b16 %v1058
            %v1148 = vunpack.c.l.b16 %v1059
            %v1149 = vunpack.c.h.b16 %v1059
            %v1150 = vunpack.c.l.b16 %v1060
            %v1151 = vunpack.c.h.b16 %v1060
            %v1152 = vunpack.c.l.b16 %v1061
            %v1153 = vunpack.c.h.b16 %v1061
            %v1154 = vunpack.c.l.b16 %v1062
            %v1155 = vunpack.c.h.b16 %v1062
            %v1156 = vunpack.c.l.b16 %v1063
            %v1157 = vunpack.c.h.b16 %v1063
            %v1158 = vunpack.c.l.b16 %v1064
            %v1159 = vunpack.c.h.b16 %v1064
            %v1160 = vunpack.c.l.b16 %v1065
            %v1161 = vunpack.c.h.b16 %v1065
            %v1162 = vpack.c.b16 %v1102, %v1098
            %v1163 = vpack.c.b16 %v1103, %v1099
            %v1164 = vpack.c.b16 %v1104, %v1100
            %v1165 = vpack.c.b16 %v1105, %v1101
            %v1166 = vpack.c.b16 %v1110, %v1106
            %v1167 = vpack.c.b16 %v1111, %v1107
            %v1168 = vpack.c.b16 %v1112, %v1108
            %v1169 = vpack.c.b16 %v1113, %v1109
            %v1170 = vpack.c.b16 %v1118, %v1114
            %v1171 = vpack.c.b16 %v1119, %v1115
            %v1172 = vpack.c.b16 %v1120, %v1116
            %v1173 = vpack.c.b16 %v1121, %v1117
            %v1174 = vpack.c.b16 %v1126, %v1122
            %v1175 = vpack.c.b16 %v1127, %v1123
            %v1176 = vpack.c.b16 %v1128, %v1124
            %v1177 = vpack.c.b16 %v1129, %v1125
            %v1178 = vpack.c.b16 %v1134, %v1130
            %v1179 = vpack.c.b16 %v1135, %v1131
            %v1180 = vpack.c.b16 %v1136, %v1132
            %v1181 = vpack.c.b16 %v1137, %v1133
            %v1182 = vpack.c.b16 %v1142, %v1138
            %v1183 = vpack.c.b16 %v1143, %v1139
            %v1184 = vpack.c.b16 %v1144, %v1140
            %v1185 = vpack.c.b16 %v1145, %v1141
            %v1186 = vpack.c.b16 %v1150, %v1146
            %v1187 = vpack.c.b16 %v1151, %v1147
            %v1188 = vpack.c.b16 %v1152, %v1148
            %v1189 = vpack.c.b16 %v1153, %v1149
            %v1190 = vpack.c.b16 %v1158, %v1154
            %v1191 = vpack.c.b16 %v1159, %v1155
            %v1192 = vpack.c.b16 %v1160, %v1156
            %v1193 = vpack.c.b16 %v1161, %v1157
            %1226 = vmatpush.bf16.msra.mxu0 %v1190
            %1227 = vmatpush.bf16.msra.mxu0 %v1186
            %1228 = vmatpush.bf16.msra.mxu0 %v1182
            %1229 = vmatpush.bf16.msra.mxu0 %v1178
            %1230 = vmatpush.bf16.msra.mxu0 %v1174
            %1231 = vmatpush.bf16.msra.mxu0 %v1170
            %1232 = vmatpush.bf16.msra.mxu0 %v1166
            %1233 = vmatpush.bf16.msra.mxu0 %v1162
            %1234 = vmatmul.bf16.gmra.mxu0 %v1033
            %v1235 = vpop.f32.mrf.mxu0
            %v1236 = vadd.f32 0.0, %v1235
            %v1237 = vpop.f32.mrf.mxu0
            %1238 = vdwg.mxu0
            %1239 = vmatpush.bf16.msra.mxu0 %v1191
            %1240 = vmatpush.bf16.msra.mxu0 %v1187
            %1241 = vmatpush.bf16.msra.mxu0 %v1183
            %1242 = vmatpush.bf16.msra.mxu0 %v1179
            %1243 = vmatpush.bf16.msra.mxu0 %v1175
            %1244 = vmatpush.bf16.msra.mxu0 %v1171
            %1245 = vmatpush.bf16.msra.mxu0 %v1167
            %1246 = vmatpush.bf16.msra.mxu0 %v1163
            %1247 = vmatmul.bf16.gmra.mxu0 %v1033
            %v1248 = vpop.f32.mrf.mxu0
            %v1249 = vadd.f32 0.0, %v1248
            %v1250 = vpop.f32.mrf.mxu0
            %1251 = vdwg.mxu0
            %1252 = vmatpush.bf16.msra.mxu0 %v1192
            %1253 = vmatpush.bf16.msra.mxu0 %v1188
            %1254 = vmatpush.bf16.msra.mxu0 %v1184
            %1255 = vmatpush.bf16.msra.mxu0 %v1180
            %1256 = vmatpush.bf16.msra.mxu0 %v1176
            %1257 = vmatpush.bf16.msra.mxu0 %v1172
            %1258 = vmatpush.bf16.msra.mxu0 %v1168
            %1259 = vmatpush.bf16.msra.mxu0 %v1164
            %1260 = vmatmul.bf16.gmra.mxu0 %v1033
            %v1261 = vpop.f32.mrf.mxu0
            %v1262 = vadd.f32 0.0, %v1261
            %v1263 = vpop.f32.mrf.mxu0
            %1264 = vdwg.mxu0
            %1265 = vmatpush.bf16.msra.mxu0 %v1193
            %1266 = vmatpush.bf16.msra.mxu0 %v1189
            %1267 = vmatpush.bf16.msra.mxu0 %v1185
            %1268 = vmatpush.bf16.msra.mxu0 %v1181
            %1269 = vmatpush.bf16.msra.mxu0 %v1177
            %1270 = vmatpush.bf16.msra.mxu0 %v1173
            %1271 = vmatpush.bf16.msra.mxu0 %v1169
            %1272 = vmatpush.bf16.msra.mxu0 %v1165
            %1273 = vmatmul.bf16.gmra.mxu0 %v1033
            %v1274 = vpop.f32.mrf.mxu0
            %v1275 = vadd.f32 0.0, %v1274
            %v1276 = vpop.f32.mrf.mxu0
            %1277 = vdwg.mxu0
            %v1278 = vmax.f32 %v1236, 0.0
            %v1279 = vmax.f32 %v1249, 0.0
            %v1280 = vmax.f32 %v1262, 0.0
            %v1281 = vmax.f32 %v1275, 0.0
            %v1282 = vld [vmem:[%s7] sm:$0xf]
            %v1284 = vperm.slane %v1282, 0
            %v1285 = vperm.slane %v1282, 1
            %v1286 = vperm.slane %v1282, 2
            %v1287 = vperm.slane %v1282, 3
            %v1292 = vmul.f32 %v1278, %v1284
            %v1293 = vmul.f32 %v1279, %v1285
            %v1294 = vmul.f32 %v1280, %v1286
            %v1295 = vmul.f32 %v1281, %v1287
            %v1296 = vsel %vm867, %v1292, 0.0
            %v1297 = vsel %vm867, %v1293, 0.0
            %v1298 = vadd.f32 %v1296, %v1297
            %v1299 = vsel %vm867, %v1294, 0.0
            %v1300 = vadd.f32 %v1298, %v1299
            %v1301 = vsel %vm867, %v1295, 0.0
            %v1302 = vadd.f32 %v1300, %v1301
            %1303 = vadd.xlane.f32.xlu0 %v1302
            %v1304 = vpop.xlane.xlu0 %1303
            %v1305 = vadd.f32 %v945, %v1304
            %v1306 = vld [vmem:[#allocation3] sm:$0x1]
            %v1308 = vperm.slane %v1306, 0
            %v1310 = vadd.f32 %v1305, %v1308
            %vm1311 = vcmask 1024
            %1312 = vst.msk [vmem:[%s525] sm:$0x3] %vm1311, %v1310
          $region96: #{tpu_custom_call.1} parent=91 // pred_fallthru
            _
          %p1313 = scmp.ne.s32.totalorder %s35, 0
          // Predicated region
          $region97: #{tpu_custom_call.1} parent=91 // pred_check
            %p1314 = pneg %p1313
          $region98: #{tpu_custom_call.1} parent=91 // pred_check_branch
            %1316 = sbr.rel (%p1314) target = $region100
          $region99: #{tpu_custom_call.1} parent=91 // pred_region
            %vm1317 = vcmask 1024
            %1318 = vst.msk [vmem:[%s525] sm:$0x3] %vm1317, %v945
          $region100: #{tpu_custom_call.1} parent=91 // pred_fallthru
            _
        $region92: #{tpu_custom_call.1} parent=59 // pred_fallthru
          _
        %p1319 = scmp.lt.s32.totalorder %s35, 1
        %s1320 = scalar_select %p1319, %s35, 1
        %s1321 = smul.addr %s1320, 2
        %s1322 = scalar_lea.vmem %s10, %s1321
        // Predicated region
        $region101: #{tpu_custom_call.1} parent=59 // pred_check
          %p1323 = pneg %p288
        $region102: #{tpu_custom_call.1} parent=59 // pred_check_branch
          %1325 = sbr.rel (%p1323) target = $region104
        $region103: #{tpu_custom_call.1} parent=59 // pred_region
          _
        $region104: #{tpu_custom_call.1} parent=59 // pred_fallthru
          _
      $region60: #{tpu_custom_call.1} parent=5 // pred_fallthru
        _
      %p1326 = scmp.le.s32.totalorder 2, %s26
      // Predicated region
      $region105: #{tpu_custom_call.1} parent=5 // pred_check
        %p1327 = pneg %p1326
      $region106: #{tpu_custom_call.1} parent=5 // pred_check_branch
        %1329 = sbr.rel (%p1327) target = $region108
      $region107: #{tpu_custom_call.1} parent=5 // pred_region
        %s1330 = ssub.s32 %s26, 2
        // Predicated region
        $region109: #{tpu_custom_call.1} parent=107 // pred_check
          %p1331 = pneg %p294
        $region110: #{tpu_custom_call.1} parent=107 // pred_check_branch
          %1333 = sbr.rel (%p1331) target = $region112
        $region111: #{tpu_custom_call.1} parent=107 // pred_region
          %p1334 = scmp.lt.s32.totalorder %s37, 1
          %s1335 = scalar_select %p1334, %s37, 1
          %s1336 = smul.addr %s1335, 2
          %s1337 = scalar_lea.vmem %s10, %s1336
        $region112: #{tpu_custom_call.1} parent=107 // pred_fallthru
          _
      $region108: #{tpu_custom_call.1} parent=5 // pred_fallthru
        _
    $region6: #{tpu_custom_call.1} parent=1 // loop_footer
      %s30 = sadd.s32 1, %s26
    $region7: #{tpu_custom_call.1} parent=1 // loop_footer_branch
      %25 = sbr.rel target = $region3
    $region8: #{tpu_custom_call.1} parent=1 // loop_exit
      _
    %1338 = vsyncpa [#allocation5], 1
    %s1339 = scalar_lea.sflag [#allocation5], 1
    %1340 = vsyncpa %s1339, 1
    %1341 = vsyncpa [#allocation7], 1
    %s1342 = scalar_lea.sflag [#allocation7], 1
    %1343 = vsyncpa %s1342, 1
    %1344 = vsyncpa [#allocation10], 1
    %1345 = vsyncpa [#allocation13], 1
    %s1346 = scalar_lea.sflag [#allocation13], 1
    %1347 = vsyncpa %s1346, 1

</llo_original>
